<compile_context>
chip_gen: v5e
topology: v5e:2x2
jax: 0.10.0
libtpu: 0.0.40
codegen_flags: <defaults>
</compile_context>

<pallas_src>
import functools

import jax
import jax.numpy as jnp
from jax import lax
from jax.experimental import pallas as pl
from jax.experimental.pallas import tpu as pltpu


def _iw_maxsquare_kernel(x_ref, acc_ref, *, n_classes, tile, hw,
                         tiles_per_chunk, needs_mask):
    c = pl.program_id(1)      # spatial chunk (core-split axis)
    t = pl.program_id(2)      # tile within chunk (reduction axis)

    @pl.when(t == 0)
    def _():
        acc_ref[...] = jnp.zeros_like(acc_ref)

    x = x_ref[0].astype(jnp.float32)                      # (C, T)

    # Channel max: stable-softmax shift AND the argmax source.
    m = jnp.max(x, axis=0, keepdims=True)                 # (1, T)
    e = jnp.exp(x - m)                                    # (C, T)
    sum_e = jnp.sum(e, axis=0, keepdims=True)             # (1, T)
    ssq = jnp.sum(e * e, axis=0, keepdims=True)           # (1, T)
    contrib = ssq / (sum_e * sum_e)                       # (1, T) = sum_c prob_c^2

    # First-max argmax over channels (matches torch.max tie-breaking).
    cid = lax.broadcasted_iota(jnp.int32, (n_classes, tile), 0)
    arg = jnp.min(jnp.where(x >= m, cid, n_classes),
                  axis=0, keepdims=True)                  # (1, T)

    if needs_mask:
        # Mask only the cheap (1,T) quantities: an out-of-range arg makes the
        # whole one-hot column zero, and zeroed contrib keeps padding garbage
        # (inf/nan) out of the matmul accumulation.  Covers both the ragged
        # last tile and clamped (duplicated) tiles of the last chunk.
        col = lax.broadcasted_iota(jnp.int32, (1, tile), 1)
        pos = (c * tiles_per_chunk + t) * tile + col
        valid = pos < hw
        arg = jnp.where(valid, arg, n_classes)
        contrib = jnp.where(valid, contrib, 0.0)

    onehot = (cid == arg).astype(jnp.float32)             # (C, T)

    # Per-class [pixel count, sum of prob^2] in a single MXU contraction over
    # the lane axis.  counts (ones column) are exact; the contrib column may
    # see bf16-pass rounding on MXU f32 emulation (~2^-9 relative).
    rhs = jnp.concatenate(
        [jnp.ones((1, tile), jnp.float32), contrib], axis=0)          # (2, T)
    partial = lax.dot_general(
        onehot, rhs,
        dimension_numbers=(((1,), (1,)), ((), ())),
        preferred_element_type=jnp.float32)                           # (C, 2)
    acc_ref[0] = acc_ref[0] + partial


def _pick_tile(hw, n_classes, itemsize, target_bytes):
    """Largest spatial tile (multiple of 128, or hw itself) with a
    (1, C, T) block of at most ~target_bytes in the input dtype."""
    lane_budget = max(128, (target_bytes // (n_classes * itemsize)) // 128 * 128)
    if hw <= lane_budget:
        return hw                              # whole image in one block
    # Prefer a multiple of 128 that divides hw (no mask, no ragged DMA),
    # but only if it stays large; otherwise keep the big tile and mask.
    t = lane_budget
    while t >= max(128, lane_budget // 2):
        if hw % t == 0:
            return t
        t -= 128
    return lane_budget


def iw_maxsquare_loss(pred, ratio=0.2, target_block_bytes=2 * 1024 * 1024):
    """pred: (N, C, H, W) logits (NCHW, same layout as PyTorch). Returns scalar.

    `target_block_bytes` controls the spatial tile; ~2 MiB per block keeps the
    double-buffered pipeline under every generation's scoped VMEM while
    amortizing grid-step overhead.  Pass bf16 `pred` to halve HBM traffic on
    v5e/v6e (the kernel computes in f32 regardless).
    """
    N, C, H, W = pred.shape
    hw = H * W
    x = pred.reshape(N, C, hw)                 # keep caller dtype

    itemsize = jnp.dtype(pred.dtype).itemsize
    T = _pick_tile(hw, C, itemsize, target_block_bytes)
    n_tiles = pl.cdiv(hw, T)
    # Split the reduction across chunks so a batch-1 input still occupies both
    # TensorCores on dual-core chips (v7x).
    n_chunks = 2 if (N == 1 and n_tiles >= 2) else 1
    tpc = pl.cdiv(n_tiles, n_chunks)
    needs_mask = (n_chunks * tpc * T) != hw

    kernel = functools.partial(
        _iw_maxsquare_kernel, n_classes=C, tile=T, hw=hw,
        tiles_per_chunk=tpc, needs_mask=needs_mask)

    def x_map(n, c, t):
        # Clamp so an over-hanging tile of the last chunk re-reads the final
        # valid block (its lanes are fully masked in-kernel) — never OOB DMA.
        return (n, 0, jnp.minimum(c * tpc + t, n_tiles - 1))

    def out_map(n, c, t):
        return (n * n_chunks + c, 0, 0)        # constant along t => accumulator

    acc = pl.pallas_call(
        kernel,
        out_shape=jax.ShapeDtypeStruct((N * n_chunks, C, 2), jnp.float32),
        grid_spec=pltpu.PrefetchScalarGridSpec(
            num_scalar_prefetch=0,
            grid=(N, n_chunks, tpc),
            in_specs=[pl.BlockSpec((1, C, T), x_map)],
            out_specs=pl.BlockSpec((1, C, 2), out_map),
        ),
        compiler_params=pltpu.CompilerParams(
            dimension_semantics=("parallel", "parallel", "arbitrary"),
            vmem_limit_bytes=32 * 1024 * 1024,
        ),
    )(x)

    # Tiny O(N*C) finalize in plain JAX: class weights + final reduction.
    acc = acc.reshape(N, n_chunks, C, 2)
    counts = jnp.sum(acc[..., 0], axis=1)                      # (N, C)
    s = jnp.sum(acc[..., 1], axis=1)                           # (N, C)
    w = 1.0 / jnp.maximum(counts ** ratio * float(hw) ** (1.0 - ratio), 1.0)
    return -jnp.sum(w * s) / (N * C)


def _reference(pred, ratio=0.2):
    """Pure-JAX reference mirroring the PyTorch forward."""
    N, C, H, W = pred.shape
    prob = jax.nn.softmax(pred, axis=1)
    arg = jnp.argmax(prob, axis=1)                             # (N, H, W)
    onehot = jax.nn.one_hot(arg, C, axis=1)                    # (N, C, H, W)
    counts = jnp.sum(onehot, axis=(2, 3))                      # (N, C)
    w = 1.0 / jnp.maximum(counts ** ratio * (H * W) ** (1.0 - ratio), 1.0)
    pix_w = jnp.einsum("nc,nchw->nhw", w, onehot)[:, None]     # (N, 1, H, W)
    return -jnp.sum(prob * prob * pix_w) / (N * C)


if __name__ == "__main__":
    # Tolerance note: the per-class [count, sum(prob^2)] contraction runs on
    # the MXU; counts are exact, but the f32 contraction may be emulated with
    # bf16 passes on some generations (~0.2% relative on the weighted sums).
    atol, rtol = 5e-4, 5e-3

    key = jax.random.PRNGKey(0)
    pred = jax.random.normal(key, (2, 4, 16, 16), dtype=jnp.float32)
    loss = iw_maxsquare_loss(pred)
    jax.block_until_ready(loss)
    ref = _reference(pred)
    assert jnp.allclose(loss, ref, atol=atol, rtol=rtol), (loss, ref)

    # Exercise the tiled + chunked + masked path: N=1 (forces the 2-chunk core
    # split), hw=576 with 128-lane tiles -> ragged last tile + one clamped
    # (fully masked) duplicate tile in the second chunk.
    pred2 = jax.random.normal(jax.random.PRNGKey(1), (1, 5, 24, 24),
                              dtype=jnp.float32)
    loss2 = iw_maxsquare_loss(pred2, target_block_bytes=4096)
    jax.block_until_ready(loss2)
    ref2 = _reference(pred2)
    assert jnp.allclose(loss2, ref2, atol=atol, rtol=rtol), (loss2, ref2)

    print("KERNEL_OK")
</pallas_src>

<mosaic_0001>
module attributes {stable_mosaic.version = 11 : i64} {
  func.func @_iw_maxsquare_kernel(%arg0: i32, %arg1: i32, %arg2: i32, %arg3: memref<1x4x256xf32, #tpu.memory_space<vmem>>, %arg4: memref<1x4x2xf32, #tpu.memory_space<vmem>>) attributes {dimension_semantics = [#tpu.dimension_semantics<parallel>, #tpu.dimension_semantics<parallel>, #tpu.dimension_semantics<arbitrary>], iteration_bounds = array<i64: 2, 1, 1>, scalar_prefetch = 0 : i64, scratch_operands = 0 : i64, tpu.core_type = #tpu.core_type<tc>, window_params = [{transform_indices = @transform_0, window_bounds = array<i64: 1, 4, 256>}, {transform_indices = @transform_1, window_bounds = array<i64: 1, 4, 2>}]} {
    %c0_i32 = arith.constant 0 : i32
    %0 = arith.cmpi eq, %arg2, %c0_i32 : i32
    %1 = arith.extui %0 : i1 to i32
    %c0_i32_0 = arith.constant 0 : i32
    %2 = arith.cmpi ne, %1, %c0_i32_0 : i32
    scf.if %2 {
      %cst_14 = arith.constant 0.000000e+00 : f32
      %37 = vector.broadcast %cst_14 : f32 to vector<1x4x2xf32>
      %c0_15 = arith.constant 0 : index
      %c0_16 = arith.constant 0 : index
      %c0_17 = arith.constant 0 : index
      %38 = vector.load %arg4[%c0_15, %c0_16, %c0_17] : memref<1x4x2xf32, #tpu.memory_space<vmem>>, vector<1x4x2xf32>
      tpu.vector_store %arg4[%c0_15, %c0_16, %c0_17], %37 {strides = array<i32>} : memref<1x4x2xf32, #tpu.memory_space<vmem>>, vector<1x4x2xf32>,
    } else {
    }
    %c0 = arith.constant 0 : index
    %c0_1 = arith.constant 0 : index
    %c0_2 = arith.constant 0 : index
    %3 = vector.load %arg3[%c0, %c0_1, %c0_2] : memref<1x4x256xf32, #tpu.memory_space<vmem>>, vector<1x4x256xf32>
    %4 = vector.shape_cast %3 : vector<1x4x256xf32> to vector<4x256xf32>
    %cst = arith.constant dense<0xFF800000> : vector<256xf32>
    %5 = vector.multi_reduction <maximumf>, %4, %cst [0] : vector<4x256xf32> to vector<256xf32>
    %6 = vector.shape_cast %5 : vector<256xf32> to vector<1x256xf32>
    %7 = vector.broadcast %6 : vector<1x256xf32> to vector<4x256xf32>
    %8 = arith.subf %4, %7 : vector<4x256xf32>
    %9 = math.exp %8 : vector<4x256xf32>
    %cst_3 = arith.constant dense<0.000000e+00> : vector<256xf32>
    %10 = vector.multi_reduction <add>, %9, %cst_3 [0] : vector<4x256xf32> to vector<256xf32>
    %11 = vector.shape_cast %10 : vector<256xf32> to vector<1x256xf32>
    %12 = arith.mulf %9, %9 : vector<4x256xf32>
    %cst_4 = arith.constant dense<0.000000e+00> : vector<256xf32>
    %13 = vector.multi_reduction <add>, %12, %cst_4 [0] : vector<4x256xf32> to vector<256xf32>
    %14 = vector.shape_cast %13 : vector<256xf32> to vector<1x256xf32>
    %15 = arith.mulf %11, %11 : vector<1x256xf32>
    %16 = arith.divf %14, %15 : vector<1x256xf32>
    %17 = tpu.iota {dimensions = array<i32: 0>} : vector<4x256xi32>
    %18 = vector.broadcast %6 : vector<1x256xf32> to vector<4x256xf32>
    %19 = arith.cmpf oge, %4, %18 : vector<4x256xf32>
    %c4_i32 = arith.constant 4 : i32
    %20 = vector.broadcast %c4_i32 : i32 to vector<4x256xi32>
    %21 = arith.select %19, %17, %20 : vector<4x256xi1>, vector<4x256xi32>
    %cst_5 = arith.constant dense<2147483647> : vector<256xi32>
    %22 = vector.multi_reduction <minsi>, %21, %cst_5 [0] : vector<4x256xi32> to vector<256xi32>
    %23 = vector.shape_cast %22 : vector<256xi32> to vector<1x256xi32>
    %24 = vector.broadcast %23 : vector<1x256xi32> to vector<4x256xi32>
    %25 = arith.cmpi eq, %17, %24 : vector<4x256xi32>
    %26 = arith.extui %25 : vector<4x256xi1> to vector<4x256xi32>
    %27 = arith.sitofp %26 : vector<4x256xi32> to vector<4x256xf32>
    %cst_6 = arith.constant 1.000000e+00 : f32
    %28 = vector.broadcast %cst_6 : f32 to vector<1x256xf32>
    %29 = tpu.concatenate %28, %16 in 0 : vector<1x256xf32>, vector<1x256xf32> -> vector<2x256xf32>
    %cst_7 = arith.constant dense<0.000000e+00> : vector<4x2xf32>
    %30 = tpu.matmul %27, %29, %cst_7 {dimension_numbers = #tpu.dot_dimension_numbers<[1], [1], [0], [0], [0, 0, 1, 0], [], []>} : vector<4x256xf32>, vector<2x256xf32>, vector<4x2xf32> -> vector<4x2xf32>
    %c0_8 = arith.constant 0 : index
    %c0_9 = arith.constant 0 : index
    %c0_10 = arith.constant 0 : index
    %31 = vector.load %arg4[%c0_8, %c0_9, %c0_10] : memref<1x4x2xf32, #tpu.memory_space<vmem>>, vector<1x4x2xf32>
    %32 = vector.shape_cast %31 : vector<1x4x2xf32> to vector<4x2xf32>
    %33 = arith.addf %32, %30 : vector<4x2xf32>
    %c0_11 = arith.constant 0 : index
    %c0_12 = arith.constant 0 : index
    %c0_13 = arith.constant 0 : index
    %34 = vector.load %arg4[%c0_11, %c0_12, %c0_13] : memref<1x4x2xf32, #tpu.memory_space<vmem>>, vector<1x4x2xf32>
    %35 = vector.shape_cast %34 : vector<1x4x2xf32> to vector<4x2xf32>
    %36 = vector.shape_cast %33 : vector<4x2xf32> to vector<1x4x2xf32>
    tpu.vector_store %arg4[%c0_11, %c0_12, %c0_13], %36 {strides = array<i32>} : memref<1x4x2xf32, #tpu.memory_space<vmem>>, vector<1x4x2xf32>,
    return
  }
  func.func @transform_0(%arg0: i32, %arg1: i32, %arg2: i32) -> (i32, i32, i32) {
    %c1_i32 = arith.constant 1 : i32
    %0 = arith.muli %arg1, %c1_i32 : i32
    %1 = arith.addi %0, %arg2 : i32
    %c0_i32 = arith.constant 0 : i32
    %2 = arith.minsi %1, %c0_i32 : i32
    %c0_i32_0 = arith.constant 0 : i32
    %c0_i32_1 = arith.constant 0 : i32
    return %arg0, %c0_i32_0, %2 : i32, i32, i32
  }
  func.func @transform_1(%arg0: i32, %arg1: i32, %arg2: i32) -> (i32, i32, i32) {
    %c1_i32 = arith.constant 1 : i32
    %0 = arith.muli %arg0, %c1_i32 : i32
    %1 = arith.addi %0, %arg1 : i32
    %c0_i32 = arith.constant 0 : i32
    %c0_i32_0 = arith.constant 0 : i32
    %c0_i32_1 = arith.constant 0 : i32
    return %1, %c0_i32, %c0_i32_0 : i32, i32, i32
  }
}

</mosaic_0001>

<llo_original>
// kernel: tpu_custom_call.1
$region0: #{tpu_custom_call.1}
  #allocation0 [shape = 'u32[]', space=smem, size = 0x4, offset = 0x4, fixed_abs, tag = 'smem constant byte address 0x4 - core index']
  #allocation1 [shape = 'u32[72,128]{1,0:T(1,128)}', space=vmem, size = 0x9000, scoped, tag = 'internal scratch']
  %s0 = inlined_call_operand.hbm [shape: f32[2,4,256], index: 0, kind: input, shape index: {}]
  %s1 = inlined_call_operand.vmem [shape: f32[2,4,2], index: 1, kind: output, shape index: {}]
  %s2 = sld [smem:[#allocation0]]
  $region45: #{tpu_custom_call.1} parent=0
    _
  %s4 = ssub.s32 1, %s2
  %s5 = scalar_select 0, %s4, %s2
  $region1: #{tpu_custom_call.1} parent=0
    #allocation2 [shape = 'u8[8192]{0}', space=vmem, size = 0x2000, scoped, tag = 'input window, operand 0']
    #allocation3 [shape = 's32[2]{0}', space=sflag, size = 0x8, scoped, tag = 'scoped memory for tpu_custom_call.1']
    %6 = vsyncpa [#allocation3], 0
    %s7 = scalar_lea.sflag [#allocation3], 1
    %8 = vsyncpa %s7, 0
    loop: start=0, step=1, limit=4
    $region2: #{tpu_custom_call.1} parent=1 // loop_pre_header
      _
    $region3: #{tpu_custom_call.1} parent=1 // loop_header
      %s10 = sphi 0, %s14
      %p11 = scmp.ge.s32.totalorder %s10, 4
      %s17 = sphi 0, %s36
      %s18 = sphi 0, %s32
      %s19 = sphi 0, %s28
      %s20 = sphi 0, %s17
      %s21 = sphi 0, %s18
      %s22 = sphi 0, %s19
      %s23 = sphi 0, %s20
      %s24 = sphi 0, %s21
      %s25 = sphi 0, %s22
      %s47 = sphi 0, %s49
      %s50 = sphi 0, %s47
      %s51 = sphi 0, %s50
      %s67 = sphi 0, %s51
      %s75 = sphi 0, %s77
      %s78 = sphi 0, %s75
      %s79 = sphi 0, %s78
      %s95 = sphi 0, %s79
    $region4: #{tpu_custom_call.1} parent=1 // loop_header_branch
      %13 = sbr.rel (%p11) target = $region8
    $region5: #{tpu_custom_call.1} parent=1 // loop_body
      %s15 = ssub.s32 %s10, 1
      %s16 = ssub.s32 %s10, 2
      %s26 = sadd.s32 1, %s19
      %p27 = scmp.ge.s32.totalorder %s26, 1
      %s28 = scalar_select %p27, 0, %s26
      %s29 = sadd.s32 1, %s18
      %s30 = scalar_select %p27, %s29, %s18
      %p31 = scmp.ge.s32.totalorder %s30, 1
      %s32 = scalar_select %p31, 0, %s30
      %s33 = sadd.s32 1, %s17
      %s34 = scalar_select %p31, %s33, %s17
      %p35 = scmp.ge.s32.totalorder %s34, 2
      %s36 = scalar_select %p35, 0, %s34
      %s37 = sadd.s32 %s18, %s19
      %p38 = scmp.lt.s32.totalorder %s37, 0
      %s39 = scalar_select %p38, %s37, 0
      %s40 = sadd.s32 %s32, %s28
      %p41 = scmp.lt.s32.totalorder %s40, 0
      %s42 = scalar_select %p41, %s40, 0
      %s43 = ssub.s32 %s17, %s36
      %s44 = ssub.s32 %s39, %s42
      %s45 = sor.u32 %s43, %s44
      %p46 = scmp.eq.s32.totalorder %s45, 0
      %s48 = sadd.s32 %s47, 1
      %s49 = scalar_select %p46, %s47, %s48
      %p52 = pneg %p46
      %p53 = scmp.eq.s32.totalorder %s10, 1
      %p54 = por %p52, %p53
      %p55 = scmp.ne.s32.totalorder %s47, %s50
      %p56 = scmp.eq.s32.totalorder %s10, 0
      %p57 = por %p55, %p56
      %p58 = scmp.ne.s32.totalorder %s47, %s50
      %p59 = scmp.eq.s32.totalorder %s15, 1
      %p60 = por %p58, %p59
      %p61 = scmp.ne.s32.totalorder %s50, %s51
      %p62 = scmp.eq.s32.totalorder %s15, 0
      %p63 = por %p61, %p62
      %p64 = scmp.ne.s32.totalorder %s50, %s51
      %p65 = scmp.eq.s32.totalorder %s16, 1
      %p66 = por %p64, %p65
      %p68 = scmp.ne.s32.totalorder %s51, %s67
      %p69 = scmp.eq.s32.totalorder %s16, 0
      %p70 = por %p68, %p69
      %s71 = sadd.s32 %s17, %s18
      %s72 = sadd.s32 %s36, %s32
      %s73 = ssub.s32 %s71, %s72
      %p74 = scmp.eq.s32.totalorder %s73, 0
      %s76 = sadd.s32 %s75, 1
      %s77 = scalar_select %p74, %s75, %s76
      %p80 = pneg %p74
      %p81 = scmp.eq.s32.totalorder %s10, 1
      %p82 = por %p80, %p81
      %p83 = scmp.ne.s32.totalorder %s75, %s78
      %p84 = scmp.eq.s32.totalorder %s10, 0
      %p85 = por %p83, %p84
      %p86 = scmp.ne.s32.totalorder %s75, %s78
      %p87 = scmp.eq.s32.totalorder %s15, 1
      %p88 = por %p86, %p87
      %p89 = scmp.ne.s32.totalorder %s78, %s79
      %p90 = scmp.eq.s32.totalorder %s15, 0
      %p91 = por %p89, %p90
      %p92 = scmp.ne.s32.totalorder %s78, %s79
      %p93 = scmp.eq.s32.totalorder %s16, 1
      %p94 = por %p92, %p93
      %p96 = scmp.ne.s32.totalorder %s79, %s95
      %p97 = scmp.eq.s32.totalorder %s16, 0
      %p98 = por %p96, %p97
      %p99 = scmp.le.s32.totalorder 1, %s10
      %p100 = scmp.lt.s32.totalorder %s10, 3
      %p101 = pnand %p99, %p100
      %p102 = pneg %p101
      // Predicated region
      $region9: #{tpu_custom_call.1} parent=5 // pred_check
        _
      $region10: #{tpu_custom_call.1} parent=5 // pred_check_branch
        %104 = sbr.rel (%p101) target = $region12
      $region11: #{tpu_custom_call.1} parent=5 // pred_region
        %s105 = ssub.s32 %s10, 1
      $region12: #{tpu_custom_call.1} parent=5 // pred_fallthru
        _
      %p106 = scmp.lt.s32.totalorder %s10, 2
      // Predicated region
      $region13: #{tpu_custom_call.1} parent=5 // pred_check
        %p107 = pneg %p106
      $region14: #{tpu_custom_call.1} parent=5 // pred_check_branch
        %109 = sbr.rel (%p107) target = $region16
      $region15: #{tpu_custom_call.1} parent=5 // pred_region
        // Predicated region
        $region17: #{tpu_custom_call.1} parent=15 // pred_check
          %p110 = pneg %p57
        $region18: #{tpu_custom_call.1} parent=15 // pred_check_branch
          %112 = sbr.rel (%p110) target = $region20
        $region19: #{tpu_custom_call.1} parent=15 // pred_region
          %s113 = sand.u32 %s47, 1
          %s114 = scalar_lea.sflag [#allocation3], %s113
          %s115 = sand.u32 %s47, 1
          %s116 = smul.addr %s115, 8
          %s117 = scalar_lea.vmem [#allocation2], %s116
          %s118 = sadd.s32 %s18, %s19
          %p119 = scmp.lt.s32.totalorder %s118, 0
          %s120 = scalar_select %p119, %s118, 0
          %s121 = smul.u32 2, %s120
          %123 = vsyncadd %s114, 0
          %s124 = smul.addr %s17, 2
          %s125 = sadd.s32 %s121, %s124
          %s126 = smul.addr %s125, 4
          %s127 = scalar_lea.hbm %s0, %s126
          %s129 = sshll.u32 %s127, 4
          %s130 = int_to_ptr.hbm [resolvable:$true] %s129
          %s131 = sshll.u32 %s117, 4
          %s132 = int_to_ptr.vmem [resolvable:$true] %s131
          %134 = dma.hbm_to_vmem [thread:$0]  %s130, 128, %s132, %s114
        $region20: #{tpu_custom_call.1} parent=15 // pred_fallthru
          _
      $region16: #{tpu_custom_call.1} parent=5 // pred_fallthru
        _
      %p135 = scmp.le.s32.totalorder 1, %s10
      %p136 = scmp.lt.s32.totalorder %s10, 3
      %p137 = pnand %p135, %p136
      %p138 = pneg %p137
      // Predicated region
      $region21: #{tpu_custom_call.1} parent=5 // pred_check
        _
      $region22: #{tpu_custom_call.1} parent=5 // pred_check_branch
        %140 = sbr.rel (%p137) target = $region24
      $region23: #{tpu_custom_call.1} parent=5 // pred_region
        %s141 = ssub.s32 %s10, 1
        %s142 = sand.u32 %s50, 1
        %s143 = scalar_lea.sflag [#allocation3], %s142
        %s144 = sand.u32 %s50, 1
        %s145 = smul.addr %s144, 8
        %s146 = scalar_lea.vmem [#allocation2], %s145
        // Predicated region
        $region25: #{tpu_custom_call.1} parent=23 // pred_check
          %p147 = pneg %p63
        $region26: #{tpu_custom_call.1} parent=23 // pred_check_branch
          %149 = sbr.rel (%p147) target = $region28
        $region27: #{tpu_custom_call.1} parent=23 // pred_region
          %151 = dma.done %s143, 128
        $region28: #{tpu_custom_call.1} parent=23 // pred_fallthru
          _
        %s152 = sand.u32 %s50, 1
        %s153 = scalar_lea.sflag [#allocation3], %s152
        %s154 = sand.u32 %s50, 1
        %s155 = smul.addr %s154, 8
        %s156 = scalar_lea.vmem [#allocation2], %s155
        %p157 = pneg %p63
        %p158 = pneg %p60
        %p159 = pneg %p91
        %p160 = pneg %p88
        %s161 = sadd.s32 %s20, %s21
        %p162 = scmp.lt.s32.totalorder %s161, 1
        %s163 = scalar_select %p162, %s161, 1
        %s164 = smul.addr %s163, 4
        %s165 = scalar_lea.vmem %s1, %s164
        %s166 = sadd.s32 %s21, %s22
        %p167 = scmp.lt.s32.totalorder %s166, 0
        %s168 = scalar_select %p167, %s166, 0
        %s169 = smul.u32 2, %s168
        %s170 = sadd.s32 %s20, %s21
        %p171 = scmp.lt.s32.totalorder %s170, 1
        %s172 = scalar_select %p171, %s170, 1
        %s173 = smul.addr %s172, 4
        %s174 = scalar_lea.vmem %s1, %s173
        %s175 = sadd.s32 %s20, %s21
        %p176 = scmp.eq.s32.totalorder %s22, 0
        // Predicated region
        $region29: #{tpu_custom_call.1} parent=23 // pred_check
          %p177 = pneg %p176
        $region30: #{tpu_custom_call.1} parent=23 // pred_check_branch
          %179 = sbr.rel (%p177) target = $region32
        $region31: #{tpu_custom_call.1} parent=23 // pred_region
          %vm180 = vcmask 11264
          %181 = vst.msk [vmem:[%s174] sm:$0xf] %vm180, 0.0
        $region32: #{tpu_custom_call.1} parent=23 // pred_fallthru
          _
        %v182 = vld [vmem:[%s146] sm:$0xff]
        %184 = vst [vmem:[#allocation1] ss:$2 sm:$0xff] %v182
        %v185 = vld.sshfl [vmem:[#allocation1] sm:$0xff pattern:$0x75316420]
        %v186 = vld.sshfl [vmem:[#allocation1 + $0x8] sm:$0xff pattern:$0x75316420]
        %vm189 = vcmask 1043456
        %v190 = vsel %vm189, %v185, -inf
        %v191 = vrot.slane %v190, 4
        %v192 = vmax.f32 %v190, %v191
        %v193 = vrot.slane %v192, 2
        %v194 = vmax.f32 %v192, %v193
        %v195 = vrot.slane %v194, 1
        %v196 = vmax.f32 %v194, %v195
        %v197 = vsel %vm189, %v186, -inf
        %v198 = vrot.slane %v197, 4
        %v199 = vmax.f32 %v197, %v198
        %v200 = vrot.slane %v199, 2
        %v201 = vmax.f32 %v199, %v200
        %v202 = vrot.slane %v201, 1
        %v203 = vmax.f32 %v201, %v202
        %v206 = vrot.slane %v203, 4
        %v207 = vsel %vm189, %v196, %v206
        %v209 = vsub.f32 %v182, %v207
        %v210 = vmul.f32 %v209, 1.442695
        %v211 = vpow.pop %v210
        %213 = vst [vmem:[#allocation1] ss:$2 sm:$0xff] %v211
        %v214 = vld.sshfl [vmem:[#allocation1] sm:$0xff pattern:$0x75316420]
        %v215 = vld.sshfl [vmem:[#allocation1 + $0x8] sm:$0xff pattern:$0x75316420]
        %v218 = vsel %vm189, %v214, 0.0
        %v219 = vrot.slane %v218, 4
        %v220 = vadd.f32 %v218, %v219
        %v221 = vrot.slane %v220, 2
        %v222 = vadd.f32 %v220, %v221
        %v223 = vrot.slane %v222, 1
        %v224 = vadd.f32 %v222, %v223
        %v225 = vsel %vm189, %v215, 0.0
        %v226 = vrot.slane %v225, 4
        %v227 = vadd.f32 %v225, %v226
        %v228 = vrot.slane %v227, 2
        %v229 = vadd.f32 %v227, %v228
        %v230 = vrot.slane %v229, 1
        %v231 = vadd.f32 %v229, %v230
        %v232 = vmul.f32 %v211, %v211
        %234 = vst [vmem:[#allocation1] ss:$2 sm:$0xff] %v232
        %v235 = vld.sshfl [vmem:[#allocation1] sm:$0xff pattern:$0x75316420]
        %v236 = vld.sshfl [vmem:[#allocation1 + $0x8] sm:$0xff pattern:$0x75316420]
        %v239 = vsel %vm189, %v235, 0.0
        %v240 = vrot.slane %v239, 4
        %v241 = vadd.f32 %v239, %v240
        %v242 = vrot.slane %v241, 2
        %v243 = vadd.f32 %v241, %v242
        %v244 = vrot.slane %v243, 1
        %v245 = vadd.f32 %v243, %v244
        %v246 = vsel %vm189, %v236, 0.0
        %v247 = vrot.slane %v246, 4
        %v248 = vadd.f32 %v246, %v247
        %v249 = vrot.slane %v248, 2
        %v250 = vadd.f32 %v248, %v249
        %v251 = vrot.slane %v250, 1
        %v252 = vadd.f32 %v250, %v251
        %v253 = vmul.f32 %v224, %v224
        %v254 = vmul.f32 %v231, %v231
        %v255 = vrcp.pop %v253
        %v256 = vmul.f32 %v253, %v255
        %v257 = vsub.f32 1.0, %v256
        %v258 = vmul.f32 %v255, %v257
        %v259 = vadd.f32 %v255, %v258
        %vm260 = vweird.f32 %v253
        %vm261 = vweird.f32 %v255
        %vm262 = vmor %vm260, %vm261
        %v263 = vsel %vm262, %v255, %v259
        %v264 = vand.u32 2147483647, %v253
        %vm265 = vcmp.eq.f32.partialorder %v264, 8.507059e+37
        %v266 = vand.u32 %v253, 2147483648
        %v267 = vor.u32 1.1754944e-38, %v266
        %v268 = vsel %vm265, %v267, %v263
        %v269 = vmul.f32 %v245, %v268
        %v270 = vrcp.pop %v254
        %v271 = vmul.f32 %v254, %v270
        %v272 = vsub.f32 1.0, %v271
        %v273 = vmul.f32 %v270, %v272
        %v274 = vadd.f32 %v270, %v273
        %vm275 = vweird.f32 %v254
        %vm276 = vweird.f32 %v270
        %vm277 = vmor %vm275, %vm276
        %v278 = vsel %vm277, %v270, %v274
        %v279 = vand.u32 2147483647, %v254
        %vm280 = vcmp.eq.f32.partialorder %v279, 8.507059e+37
        %v281 = vand.u32 %v254, 2147483648
        %v282 = vor.u32 1.1754944e-38, %v281
        %v283 = vsel %vm280, %v282, %v278
        %v284 = vmul.f32 %v252, %v283
        %v285 = vlaneseq
        %v286 = vshrl.u32 %v285, 7
        %vm287 = vcmp.ge.f32.partialorder %v182, %v207
        %v289 = vunpack.c.l.s4 839922192
        %v290 = vunpack.c.0.s8 %v289
        %v291 = vperm.slane %v286, %v290
        %v292 = vsel %vm287, %v291, 4
        %293 = vst [vmem:[#allocation1] ss:$2 sm:$0xff] %v292
        %v294 = vld.sshfl [vmem:[#allocation1] sm:$0xff pattern:$0x75316420]
        %v295 = vld.sshfl [vmem:[#allocation1 + $0x8] sm:$0xff pattern:$0x75316420]
        %v296 = vsel %vm189, %v294, 2147483647
        %v297 = vrot.slane %v296, 4
        %vm298 = vcmp.lt.s32.totalorder %v296, %v297
        %v299 = vsel %vm298, %v296, %v297
        %v300 = vrot.slane %v299, 2
        %vm301 = vcmp.lt.s32.totalorder %v299, %v300
        %v302 = vsel %vm301, %v299, %v300
        %v303 = vrot.slane %v302, 1
        %vm304 = vcmp.lt.s32.totalorder %v302, %v303
        %v305 = vsel %vm304, %v302, %v303
        %v306 = vsel %vm189, %v295, 2147483647
        %v307 = vrot.slane %v306, 4
        %vm308 = vcmp.lt.s32.totalorder %v306, %v307
        %v309 = vsel %vm308, %v306, %v307
        %v310 = vrot.slane %v309, 2
        %vm311 = vcmp.lt.s32.totalorder %v309, %v310
        %v312 = vsel %vm311, %v309, %v310
        %v313 = vrot.slane %v312, 1
        %vm314 = vcmp.lt.s32.totalorder %v312, %v313
        %v315 = vsel %vm314, %v312, %v313
        %vm316 = vcmp.eq.s32.totalorder %v286, %v305
        %vm317 = vcmp.eq.s32.totalorder %v286, %v315
        %v318 = vsel %vm316, 1, 0
        %v319 = vsel %vm317, 1, 0
        %v320 = vcvt.s32.f32 %v318
        %v321 = vcvt.s32.f32 %v319
        %vm322 = vcmask 1040384
        %v323 = vsel %vm322, 1.0, %v269
        %v324 = vsel %vm322, 1.0, %v284
        %325 = vmatpush.xpose.msra.mxu0 0.0
        %326 = vmatpush.xpose.msra.mxu0 0.0
        %327 = vmatpush.xpose.msra.mxu0 0.0
        %328 = vmatpush.xpose.msra.mxu0 0.0
        %329 = vmatpush.xpose.msra.mxu0 0.0
        %330 = vmatpush.xpose.msra.mxu0 0.0
        %331 = vmatpush.xpose.msra.mxu0 0.0
        %332 = vmatpush.xpose.msra.mxu0 0.0
        %333 = vmatpush.xpose.msra.mxu0 0.0
        %334 = vmatpush.xpose.msra.mxu0 0.0
        %335 = vmatpush.xpose.msra.mxu0 0.0
        %336 = vmatpush.xpose.msra.mxu0 0.0
        %337 = vmatpush.xpose.msra.mxu0 0.0
        %338 = vmatpush.xpose.msra.mxu0 0.0
        %339 = vmatpush.xpose.msra.mxu0 0.0
        %340 = vmatpush.xpose.msra.mxu0 %v323
        %341 = vmatmul.f32.gmra.mxu0 %v320
        %v342 = vpop.f32.mrf.mxu0
        %v343 = vadd.f32 0.0, %v342
        %344 = vdwg.mxu0
        %345 = vmatpush.xpose.msra.mxu0 0.0
        %346 = vmatpush.xpose.msra.mxu0 0.0
        %347 = vmatpush.xpose.msra.mxu0 0.0
        %348 = vmatpush.xpose.msra.mxu0 0.0
        %349 = vmatpush.xpose.msra.mxu0 0.0
        %350 = vmatpush.xpose.msra.mxu0 0.0
        %351 = vmatpush.xpose.msra.mxu0 0.0
        %352 = vmatpush.xpose.msra.mxu0 0.0
        %353 = vmatpush.xpose.msra.mxu0 0.0
        %354 = vmatpush.xpose.msra.mxu0 0.0
        %355 = vmatpush.xpose.msra.mxu0 0.0
        %356 = vmatpush.xpose.msra.mxu0 0.0
        %357 = vmatpush.xpose.msra.mxu0 0.0
        %358 = vmatpush.xpose.msra.mxu0 0.0
        %359 = vmatpush.xpose.msra.mxu0 0.0
        %360 = vmatpush.xpose.msra.mxu0 %v324
        %361 = vmatmul.f32.gmra.mxu0 %v321
        %v362 = vpop.f32.mrf.mxu0
        %v363 = vadd.f32 %v343, %v362
        %364 = vdwg.mxu0
        %v365 = vld [vmem:[%s174] sm:$0xf]
        %v366 = vadd.f32 %v365, %v363
        %vm367 = vcmask 11264
        %368 = vst.msk [vmem:[%s174] sm:$0xf] %vm367, %v366
        %s369 = sadd.s32 %s20, %s21
        %p370 = scmp.lt.s32.totalorder %s369, 1
        %s371 = scalar_select %p370, %s369, 1
        %s372 = smul.addr %s371, 4
        %s373 = scalar_lea.vmem %s1, %s372
        // Predicated region
        $region33: #{tpu_custom_call.1} parent=23 // pred_check
          %p374 = pneg %p88
        $region34: #{tpu_custom_call.1} parent=23 // pred_check_branch
          %376 = sbr.rel (%p374) target = $region36
        $region35: #{tpu_custom_call.1} parent=23 // pred_region
          %s377 = sadd.s32 %s20, %s21
        $region36: #{tpu_custom_call.1} parent=23 // pred_fallthru
          _
      $region24: #{tpu_custom_call.1} parent=5 // pred_fallthru
        _
      %p378 = scmp.le.s32.totalorder 2, %s10
      // Predicated region
      $region37: #{tpu_custom_call.1} parent=5 // pred_check
        %p379 = pneg %p378
      $region38: #{tpu_custom_call.1} parent=5 // pred_check_branch
        %381 = sbr.rel (%p379) target = $region40
      $region39: #{tpu_custom_call.1} parent=5 // pred_region
        %s382 = ssub.s32 %s10, 2
        // Predicated region
        $region41: #{tpu_custom_call.1} parent=39 // pred_check
          %p383 = pneg %p94
        $region42: #{tpu_custom_call.1} parent=39 // pred_check_branch
          %385 = sbr.rel (%p383) target = $region44
        $region43: #{tpu_custom_call.1} parent=39 // pred_region
          %s386 = sadd.s32 %s23, %s24
          %p387 = scmp.lt.s32.totalorder %s386, 1
          %s388 = scalar_select %p387, %s386, 1
          %s389 = smul.addr %s388, 4
          %s390 = scalar_lea.vmem %s1, %s389
        $region44: #{tpu_custom_call.1} parent=39 // pred_fallthru
          _
      $region40: #{tpu_custom_call.1} parent=5 // pred_fallthru
        _
    $region6: #{tpu_custom_call.1} parent=1 // loop_footer
      %s14 = sadd.s32 1, %s10
    $region7: #{tpu_custom_call.1} parent=1 // loop_footer_branch
      %9 = sbr.rel target = $region3
    $region8: #{tpu_custom_call.1} parent=1 // loop_exit
      _
    %391 = vsyncpa [#allocation3], 1
    %s392 = scalar_lea.sflag [#allocation3], 1
    %393 = vsyncpa %s392, 1

</llo_original>
